<compile_context>
chip_gen: v6e
topology: v6e:2x2x1
jax: 0.10.0
libtpu: 0.0.40
codegen_flags: <defaults>
</compile_context>

<pallas_src>
import functools

import jax
import jax.numpy as jnp
import numpy as np
from jax.experimental import pallas as pl
from jax.experimental.pallas import tpu as pltpu

LANE = 128                       # vreg lane width
_MAX_TILE = 256                  # fills the 256-wide MXU on v6e/v7x, fine on v5e
_VMEM_LIMIT = 32 * 1024 * 1024   # within scoped VMEM on v5e/v6e/v7x
_FUSED_VMEM_BUDGET = 20 * 1024 * 1024  # use fused path if working set fits here


def _round_up(x, m):
    return ((x + m - 1) // m) * m


def _pick_tile(dim_padded, pref=_MAX_TILE):
    # dim_padded is a multiple of 128; pick the largest tile that divides it.
    for t in (pref, LANE):
        if dim_padded % t == 0:
            return t
    return dim_padded


# ----------------------- Generic tiled matmul kernel -------------------------

def _matmul_bias_act_kernel(x_ref, w_ref, b_ref, o_ref, acc_ref, *, activation):
    """o = act(x @ w + b), accumulated over the K grid axis in f32 scratch."""
    @pl.when(pl.program_id(2) == 0)
    def _init():
        acc_ref[...] = jnp.zeros_like(acc_ref)

    acc_ref[...] += jnp.dot(x_ref[...], w_ref[...],
                            preferred_element_type=jnp.float32)

    @pl.when(pl.program_id(2) == pl.num_programs(2) - 1)
    def _finalize():
        y = acc_ref[...] + b_ref[...].astype(jnp.float32)
        if activation == "relu":
            y = jnp.maximum(y, 0.0)
        o_ref[...] = y.astype(o_ref.dtype)


def pallas_matmul_bias_act(x, w, b, *, activation=None, out_dtype=jnp.bfloat16):
    """y = act(x @ w + b).  x:[M,K], w:[K,N], b:[1,N]; all dims multiples of 128."""
    m, k = x.shape
    k2, n = w.shape
    assert k == k2 and b.shape == (1, n)
    tm, tn, tk = _pick_tile(m), _pick_tile(n), _pick_tile(k)
    grid = (m // tm, n // tn, k // tk)

    cost = pl.CostEstimate(
        flops=2 * m * n * k,
        transcendentals=0,
        bytes_accessed=(m * k * x.dtype.itemsize
                        + k * n * w.dtype.itemsize
                        + m * n * np.dtype(out_dtype).itemsize),
    )
    return pl.pallas_call(
        functools.partial(_matmul_bias_act_kernel, activation=activation),
        out_shape=jax.ShapeDtypeStruct((m, n), out_dtype),
        grid_spec=pltpu.PrefetchScalarGridSpec(
            num_scalar_prefetch=0,
            grid=grid,
            in_specs=[
                pl.BlockSpec((tm, tk), lambda i, j, kk: (i, kk)),
                pl.BlockSpec((tk, tn), lambda i, j, kk: (kk, j)),
                pl.BlockSpec((1, tn), lambda i, j, kk: (0, j)),
            ],
            out_specs=pl.BlockSpec((tm, tn), lambda i, j, kk: (i, j)),
            scratch_shapes=[pltpu.VMEM((tm, tn), jnp.float32)],
        ),
        compiler_params=pltpu.CompilerParams(
            dimension_semantics=("parallel", "parallel", "arbitrary"),
            vmem_limit_bytes=_VMEM_LIMIT,
        ),
        cost_estimate=cost,
    )(x, w, b)


# ------------------------ Fused whole-forward kernel --------------------------

def _fused_gcn_kernel(x_ref, a_ref, w0_ref, b0_ref, wc_ref, bc_ref,
                      w1_ref, b1_ref, o_ref, *, n_layers):
    """Entire GCN forward with activations resident on-chip (bf16 between matmuls)."""
    cd = jnp.bfloat16
    # lin0 + relu
    h = jnp.dot(x_ref[...], w0_ref[...], preferred_element_type=jnp.float32)
    h = jnp.maximum(h + b0_ref[...], 0.0).astype(cd)
    # conv layers: h = relu(A_hat @ (h @ W^T) + b)
    for l in range(n_layers):
        xw = jnp.dot(h, wc_ref[l], preferred_element_type=jnp.float32).astype(cd)
        h = jnp.dot(a_ref[...], xw, preferred_element_type=jnp.float32)
        h = jnp.maximum(h + bc_ref[l], 0.0).astype(cd)
    # lin1 (lane-dense [N,128] output, sliced to [:, :1] outside)
    o = jnp.dot(h, w1_ref[...], preferred_element_type=jnp.float32) + b1_ref[...]
    o_ref[...] = o.astype(o_ref.dtype)


def pallas_fused_gcn(x_p, a_p, w0, b0, wc, bc, w1, b1, n_layers):
    n_p, f_p = x_p.shape
    h_p = w0.shape[1]
    flops = (2 * n_p * f_p * h_p
             + n_layers * (2 * n_p * h_p * h_p + 2 * n_p * n_p * h_p)
             + 2 * n_p * h_p * LANE)
    bytes_accessed = sum(int(np.prod(a.shape)) * a.dtype.itemsize
                         for a in (x_p, a_p, w0, b0, wc, bc, w1, b1))
    bytes_accessed += n_p * LANE * 4
    cost = pl.CostEstimate(flops=flops, transcendentals=0,
                           bytes_accessed=bytes_accessed)
    return pl.pallas_call(
        functools.partial(_fused_gcn_kernel, n_layers=n_layers),
        out_shape=jax.ShapeDtypeStruct((n_p, LANE), jnp.float32),
        compiler_params=pltpu.CompilerParams(vmem_limit_bytes=_VMEM_LIMIT),
        cost_estimate=cost,
    )(x_p, a_p, w0, b0, wc, bc, w1, b1)


# ------------------------------- JAX glue ------------------------------------

def gcn_normalized_adj(edge_index, num_nodes, edge_weight=None):
    """Dense D^{-1/2} (A + I) D^{-1/2}, matching PyG gcn_norm (source_to_target)."""
    src = edge_index[0]
    dst = edge_index[1]
    if edge_weight is None:
        edge_weight = jnp.ones(src.shape[0], dtype=jnp.float32)
    a = jnp.zeros((num_nodes, num_nodes), dtype=jnp.float32)
    a = a.at[dst, src].add(edge_weight)               # message src -> dst
    a = a + jnp.eye(num_nodes, dtype=jnp.float32)     # self loops, weight 1
    deg = jnp.sum(a, axis=1)
    dinv_sqrt = jnp.where(deg > 0.0, jax.lax.rsqrt(deg), 0.0)
    return dinv_sqrt[:, None] * a * dinv_sqrt[None, :]


def _pad2(a, rows, cols, dtype=None):
    out = jnp.zeros((rows, cols), dtype=dtype if dtype is not None else a.dtype)
    return out.at[: a.shape[0], : a.shape[1]].set(a.astype(out.dtype))


def init_gcn_params(key, nfeat, hidden, n_layers, nclass_unused=1):
    """Deterministic synthetic parameters with PyTorch-like shapes."""
    params = {}
    k = key
    k, sub = jax.random.split(k)
    params["lin0_w"] = jax.random.normal(sub, (hidden, nfeat), jnp.float32) * 0.1
    k, sub = jax.random.split(k)
    params["lin0_b"] = jax.random.normal(sub, (hidden,), jnp.float32) * 0.1
    params["convs"] = []
    for _ in range(n_layers):
        k, sub = jax.random.split(k)
        w = jax.random.normal(sub, (hidden, hidden), jnp.float32) * 0.1
        k, sub = jax.random.split(k)
        b = jax.random.normal(sub, (hidden,), jnp.float32) * 0.1
        params["convs"].append((w, b))
    k, sub = jax.random.split(k)
    params["lin1_w"] = jax.random.normal(sub, (1, hidden), jnp.float32) * 0.1
    k, sub = jax.random.split(k)
    params["lin1_b"] = jax.random.normal(sub, (1,), jnp.float32) * 0.1
    return params


def _fused_vmem_estimate(n_p, f_p, h_p, n_layers):
    """Rough working-set estimate (bytes) for the fused single-call kernel."""
    inputs = (n_p * f_p * 2 + n_p * n_p * 2 + f_p * h_p * 2 + h_p * 4
              + max(n_layers, 1) * (h_p * h_p * 2 + h_p * 4)
              + h_p * LANE * 2 + LANE * 4)
    out = n_p * LANE * 4
    temps = 3 * n_p * h_p * 4            # h (f32 acc), xw, bf16 copies
    return inputs + out + temps


def gcn_forward(params, x, edge_index, edge_weight=None):
    """Forward pass (dropout p=0.0 / eval -> identity)."""
    n, f = x.shape
    hidden = params["lin0_w"].shape[0]
    n_layers = len(params["convs"])
    compute_dtype = jnp.bfloat16

    n_p = _round_up(n, LANE)          # padded node count (rows AND A_hat lanes)
    f_p = _round_up(f, LANE)          # padded input-feature dim
    h_p = _round_up(hidden, LANE)     # padded hidden dim

    a_hat = gcn_normalized_adj(edge_index, n, edge_weight)
    a_p = _pad2(a_hat, n_p, n_p, compute_dtype)
    x_p = _pad2(x, n_p, f_p, compute_dtype)

    w0_p = _pad2(params["lin0_w"].T, f_p, h_p, compute_dtype)
    b0_p = _pad2(params["lin0_b"][None, :], 1, h_p, jnp.float32)
    w1_p = _pad2(params["lin1_w"].T, h_p, LANE, compute_dtype)
    b1_p = _pad2(params["lin1_b"][None, :], 1, LANE, jnp.float32)

    if _fused_vmem_estimate(n_p, f_p, h_p, n_layers) <= _FUSED_VMEM_BUDGET:
        # --- fused single-call path: activations stay on-chip across layers ---
        if n_layers > 0:
            wc = jnp.stack([_pad2(w.T, h_p, h_p, compute_dtype)
                            for w, _ in params["convs"]], axis=0)
            bc = jnp.stack([_pad2(b[None, :], 1, h_p, jnp.float32)
                            for _, b in params["convs"]], axis=0)
        else:  # dummy (unused) weights so shapes are valid
            wc = jnp.zeros((1, h_p, h_p), compute_dtype)
            bc = jnp.zeros((1, 1, h_p), jnp.float32)
        out_p = pallas_fused_gcn(x_p, a_p, w0_p, b0_p, wc, bc, w1_p, b1_p,
                                 n_layers)
        return out_p[:n, :1]

    # --- tiled fallback path (large graphs) ---
    h = pallas_matmul_bias_act(x_p, w0_p, b0_p, activation="relu")
    zero_bias_h = jnp.zeros((1, h_p), jnp.float32)
    for w, b in params["convs"]:
        wl_p = _pad2(w.T, h_p, h_p, compute_dtype)
        bl_p = _pad2(b[None, :], 1, h_p, jnp.float32)
        # Hoisted X @ W: computed once, reused by every A_hat row tile.
        xw = pallas_matmul_bias_act(h, wl_p, zero_bias_h, activation=None)
        h = pallas_matmul_bias_act(a_p, xw, bl_p, activation="relu")
    out_p = pallas_matmul_bias_act(h, w1_p, b1_p, activation=None,
                                   out_dtype=jnp.float32)
    return out_p[:n, :1]


def gcn_reference(params, x, edge_index, edge_weight=None):
    """Pure-JAX f32 reference for validation."""
    n = x.shape[0]
    a_hat = gcn_normalized_adj(edge_index, n, edge_weight)
    h = jnp.maximum(x @ params["lin0_w"].T + params["lin0_b"], 0.0)
    for w, b in params["convs"]:
        h = jnp.maximum(a_hat @ (h @ w.T) + b, 0.0)
    return h @ params["lin1_w"].T + params["lin1_b"]


# --------------------------------- main ---------------------------------------

if __name__ == "__main__":
    key = jax.random.PRNGKey(0)

    num_nodes = 16
    nfeat = 16
    hidden = 32
    n_layers = 2
    num_edges = 40

    k_x, k_e, k_w, k_p = jax.random.split(key, 4)
    x = jax.random.normal(k_x, (num_nodes, nfeat), jnp.float32)
    edge_index = jax.random.randint(k_e, (2, num_edges), 0, num_nodes, jnp.int32)
    edge_weight = jax.random.uniform(k_w, (num_edges,), jnp.float32) + 0.5

    params = init_gcn_params(k_p, nfeat, hidden, n_layers)

    out = gcn_forward(params, x, edge_index, edge_weight)
    out = jax.block_until_ready(out)
    assert out.shape == (num_nodes, 1)
    assert out.dtype == jnp.float32

    # Validate against an f32 pure-JAX reference (bf16 operands => loose tol).
    ref = gcn_reference(params, x, edge_index, edge_weight)
    max_err = float(jnp.max(jnp.abs(out - ref)))
    assert max_err < 5e-2, f"max abs error {max_err}"

    print("KERNEL_OK")
</pallas_src>

<mosaic_0001>
module attributes {stable_mosaic.version = 11 : i64} {
  func.func @_fused_gcn_kernel(%arg0: memref<128x128xbf16, #tpu.memory_space<vmem>>, %arg1: memref<128x128xbf16, #tpu.memory_space<vmem>>, %arg2: memref<128x128xbf16, #tpu.memory_space<vmem>>, %arg3: memref<1x128xf32, #tpu.memory_space<vmem>>, %arg4: memref<2x128x128xbf16, #tpu.memory_space<vmem>>, %arg5: memref<2x1x128xf32, #tpu.memory_space<vmem>>, %arg6: memref<128x128xbf16, #tpu.memory_space<vmem>>, %arg7: memref<1x128xf32, #tpu.memory_space<vmem>>, %arg8: memref<128x128xf32, #tpu.memory_space<vmem>>) attributes {dimension_semantics = [], scalar_prefetch = 0 : i64, scratch_operands = 0 : i64, tpu.core_type = #tpu.core_type<tc>} {
    %c0 = arith.constant 0 : index
    %c0_0 = arith.constant 0 : index
    %0 = vector.load %arg0[%c0, %c0_0] : memref<128x128xbf16, #tpu.memory_space<vmem>>, vector<128x128xbf16>
    %c0_1 = arith.constant 0 : index
    %c0_2 = arith.constant 0 : index
    %1 = vector.load %arg2[%c0_1, %c0_2] : memref<128x128xbf16, #tpu.memory_space<vmem>>, vector<128x128xbf16>
    %cst = arith.constant dense<0.000000e+00> : vector<128x128xf32>
    %2 = tpu.matmul %0, %1, %cst {dimension_numbers = #tpu.dot_dimension_numbers<[1], [0], [0], [1], [0, 0, 1, 1], [], []>} : vector<128x128xbf16>, vector<128x128xbf16>, vector<128x128xf32> -> vector<128x128xf32>
    %c0_3 = arith.constant 0 : index
    %c0_4 = arith.constant 0 : index
    %3 = vector.load %arg3[%c0_3, %c0_4] : memref<1x128xf32, #tpu.memory_space<vmem>>, vector<1x128xf32>
    %4 = vector.broadcast %3 : vector<1x128xf32> to vector<128x128xf32>
    %5 = arith.addf %2, %4 : vector<128x128xf32>
    %cst_5 = arith.constant 0.000000e+00 : f32
    %6 = vector.broadcast %cst_5 : f32 to vector<128x128xf32>
    %7 = arith.maximumf %5, %6 : vector<128x128xf32>
    %8 = arith.truncf %7 : vector<128x128xf32> to vector<128x128xbf16>
    %c0_6 = arith.constant 0 : index
    %c0_7 = arith.constant 0 : index
    %c0_8 = arith.constant 0 : index
    %9 = vector.load %arg4[%c0_6, %c0_7, %c0_8] : memref<2x128x128xbf16, #tpu.memory_space<vmem>>, vector<1x128x128xbf16>
    %10 = vector.shape_cast %9 : vector<1x128x128xbf16> to vector<128x128xbf16>
    %cst_9 = arith.constant dense<0.000000e+00> : vector<128x128xf32>
    %11 = tpu.matmul %8, %10, %cst_9 {dimension_numbers = #tpu.dot_dimension_numbers<[1], [0], [0], [1], [0, 0, 1, 1], [], []>} : vector<128x128xbf16>, vector<128x128xbf16>, vector<128x128xf32> -> vector<128x128xf32>
    %12 = arith.truncf %11 : vector<128x128xf32> to vector<128x128xbf16>
    %c0_10 = arith.constant 0 : index
    %c0_11 = arith.constant 0 : index
    %13 = vector.load %arg1[%c0_10, %c0_11] : memref<128x128xbf16, #tpu.memory_space<vmem>>, vector<128x128xbf16>
    %cst_12 = arith.constant dense<0.000000e+00> : vector<128x128xf32>
    %14 = tpu.matmul %13, %12, %cst_12 {dimension_numbers = #tpu.dot_dimension_numbers<[1], [0], [0], [1], [0, 0, 1, 1], [], []>} : vector<128x128xbf16>, vector<128x128xbf16>, vector<128x128xf32> -> vector<128x128xf32>
    %c0_13 = arith.constant 0 : index
    %c0_14 = arith.constant 0 : index
    %c0_15 = arith.constant 0 : index
    %15 = vector.load %arg5[%c0_13, %c0_14, %c0_15] : memref<2x1x128xf32, #tpu.memory_space<vmem>>, vector<1x1x128xf32>
    %16 = vector.shape_cast %15 : vector<1x1x128xf32> to vector<1x128xf32>
    %17 = vector.broadcast %16 : vector<1x128xf32> to vector<128x128xf32>
    %18 = arith.addf %14, %17 : vector<128x128xf32>
    %cst_16 = arith.constant 0.000000e+00 : f32
    %19 = vector.broadcast %cst_16 : f32 to vector<128x128xf32>
    %20 = arith.maximumf %18, %19 : vector<128x128xf32>
    %21 = arith.truncf %20 : vector<128x128xf32> to vector<128x128xbf16>
    %c1 = arith.constant 1 : index
    %c0_17 = arith.constant 0 : index
    %c0_18 = arith.constant 0 : index
    %22 = vector.load %arg4[%c1, %c0_17, %c0_18] : memref<2x128x128xbf16, #tpu.memory_space<vmem>>, vector<1x128x128xbf16>
    %23 = vector.shape_cast %22 : vector<1x128x128xbf16> to vector<128x128xbf16>
    %cst_19 = arith.constant dense<0.000000e+00> : vector<128x128xf32>
    %24 = tpu.matmul %21, %23, %cst_19 {dimension_numbers = #tpu.dot_dimension_numbers<[1], [0], [0], [1], [0, 0, 1, 1], [], []>} : vector<128x128xbf16>, vector<128x128xbf16>, vector<128x128xf32> -> vector<128x128xf32>
    %25 = arith.truncf %24 : vector<128x128xf32> to vector<128x128xbf16>
    %c0_20 = arith.constant 0 : index
    %c0_21 = arith.constant 0 : index
    %26 = vector.load %arg1[%c0_20, %c0_21] : memref<128x128xbf16, #tpu.memory_space<vmem>>, vector<128x128xbf16>
    %cst_22 = arith.constant dense<0.000000e+00> : vector<128x128xf32>
    %27 = tpu.matmul %26, %25, %cst_22 {dimension_numbers = #tpu.dot_dimension_numbers<[1], [0], [0], [1], [0, 0, 1, 1], [], []>} : vector<128x128xbf16>, vector<128x128xbf16>, vector<128x128xf32> -> vector<128x128xf32>
    %c1_23 = arith.constant 1 : index
    %c0_24 = arith.constant 0 : index
    %c0_25 = arith.constant 0 : index
    %28 = vector.load %arg5[%c1_23, %c0_24, %c0_25] : memref<2x1x128xf32, #tpu.memory_space<vmem>>, vector<1x1x128xf32>
    %29 = vector.shape_cast %28 : vector<1x1x128xf32> to vector<1x128xf32>
    %30 = vector.broadcast %29 : vector<1x128xf32> to vector<128x128xf32>
    %31 = arith.addf %27, %30 : vector<128x128xf32>
    %cst_26 = arith.constant 0.000000e+00 : f32
    %32 = vector.broadcast %cst_26 : f32 to vector<128x128xf32>
    %33 = arith.maximumf %31, %32 : vector<128x128xf32>
    %34 = arith.truncf %33 : vector<128x128xf32> to vector<128x128xbf16>
    %c0_27 = arith.constant 0 : index
    %c0_28 = arith.constant 0 : index
    %35 = vector.load %arg6[%c0_27, %c0_28] : memref<128x128xbf16, #tpu.memory_space<vmem>>, vector<128x128xbf16>
    %cst_29 = arith.constant dense<0.000000e+00> : vector<128x128xf32>
    %36 = tpu.matmul %34, %35, %cst_29 {dimension_numbers = #tpu.dot_dimension_numbers<[1], [0], [0], [1], [0, 0, 1, 1], [], []>} : vector<128x128xbf16>, vector<128x128xbf16>, vector<128x128xf32> -> vector<128x128xf32>
    %c0_30 = arith.constant 0 : index
    %c0_31 = arith.constant 0 : index
    %37 = vector.load %arg7[%c0_30, %c0_31] : memref<1x128xf32, #tpu.memory_space<vmem>>, vector<1x128xf32>
    %38 = vector.broadcast %37 : vector<1x128xf32> to vector<128x128xf32>
    %39 = arith.addf %36, %38 : vector<128x128xf32>
    %c0_32 = arith.constant 0 : index
    %c0_33 = arith.constant 0 : index
    %40 = vector.load %arg8[%c0_32, %c0_33] : memref<128x128xf32, #tpu.memory_space<vmem>>, vector<128x128xf32>
    tpu.vector_store %arg8[%c0_32, %c0_33], %39 {strides = array<i32>} : memref<128x128xf32, #tpu.memory_space<vmem>>, vector<128x128xf32>,
    return
  }
}

</mosaic_0001>

<llo_original>
// kernel: tpu_custom_call.1
$region0: #{tpu_custom_call.1}
  #allocation0 [shape = 'u32[]', space=smem, size = 0x4, offset = 0x4, fixed_abs, tag = 'smem constant byte address 0x4 - core index']
  #allocation1 [shape = 'u32[144,128]{1,0:T(1,128)}', space=vmem, size = 0x12000, scoped, tag = 'internal scratch']
  %s0 = inlined_call_operand.hbm [shape: bf16[128,128], index: 0, kind: input, shape index: {}]
  %s1 = inlined_call_operand.hbm [shape: bf16[128,128], index: 1, kind: input, shape index: {}]
  %s2 = inlined_call_operand.hbm [shape: bf16[128,128], index: 2, kind: input, shape index: {}]
  %s3 = inlined_call_operand.vmem [shape: f32[1,128], index: 3, kind: input, shape index: {}]
  %s4 = inlined_call_operand.hbm [shape: bf16[2,128,128], index: 4, kind: input, shape index: {}]
  %s5 = inlined_call_operand.vmem [shape: f32[2,1,128], index: 5, kind: input, shape index: {}]
  %s6 = inlined_call_operand.hbm [shape: bf16[128,128], index: 6, kind: input, shape index: {}]
  %s7 = inlined_call_operand.vmem [shape: f32[1,128], index: 7, kind: input, shape index: {}]
  %s8 = inlined_call_operand.hbm [shape: f32[128,128], index: 8, kind: output, shape index: {}]
  %s9 = sld [smem:[#allocation0]]
  $region62: #{tpu_custom_call.1} parent=0
    _
  %s11 = ssub.s32 1, %s9
  %s12 = scalar_select 0, %s11, %s9
  $region1: #{tpu_custom_call.1} parent=0
    #allocation2 [shape = 'u8[32768]{0}', space=vmem, size = 0x8000, scoped, tag = 'input window, operand 0, single buffered']
    #allocation3 [shape = 's32[1]{0}', space=sflag, size = 0x4, scoped, tag = 'scoped memory for tpu_custom_call.1']
    #allocation4 [shape = 's32[1]{0}', space=sflag, size = 0x4, scoped, tag = 'scoped memory for tpu_custom_call.1']
    #allocation5 [shape = 'u8[32768]{0}', space=vmem, size = 0x8000, scoped, tag = 'input window, operand 1, single buffered']
    #allocation6 [shape = 's32[1]{0}', space=sflag, size = 0x4, scoped, tag = 'scoped memory for tpu_custom_call.1']
    #allocation7 [shape = 'u8[32768]{0}', space=vmem, size = 0x8000, scoped, tag = 'input window, operand 2, single buffered']
    #allocation8 [shape = 'u8[65536]{0}', space=vmem, size = 0x10000, scoped, tag = 'input window, operand 4, single buffered']
    #allocation9 [shape = 's32[1]{0}', space=sflag, size = 0x4, scoped, tag = 'scoped memory for tpu_custom_call.1']
    #allocation10 [shape = 'u8[32768]{0}', space=vmem, size = 0x8000, scoped, tag = 'input window, operand 6, single buffered']
    #allocation11 [shape = 'u8[65536]{0}', space=vmem, size = 0x10000, scoped, tag = 'output window, operand 0, single buffered']
    %13 = vsyncpa [#allocation3], 0
    %14 = vsyncpa [#allocation6], 0
    %15 = vsyncpa [#allocation9], 0
    %16 = vsyncpa [#allocation4], 0
    // Predicated region
    $region2: #{tpu_custom_call.1} parent=1 // pred_check
      _
    $region3: #{tpu_custom_call.1} parent=1 // pred_check_branch
      %18 = sbr.rel (0) target = $region5
    $region4: #{tpu_custom_call.1} parent=1 // pred_region
      %s20 = ssub.s32 1024, 1024
      %21 = vsyncadd [#allocation3], %s20
      %s22 = sshll.u32 [#allocation2], 4
      %s23 = int_to_ptr.vmem [resolvable:$true] %s22
      %28 = dma.hbm_to_vmem [thread:$0]  %s0, 1024, %s23, [#allocation3], 64, 64, 4
    $region5: #{tpu_custom_call.1} parent=1 // pred_fallthru
      _
    // Predicated region
    $region6: #{tpu_custom_call.1} parent=1 // pred_check
      _
    $region7: #{tpu_custom_call.1} parent=1 // pred_check_branch
      %30 = sbr.rel (0) target = $region9
    $region8: #{tpu_custom_call.1} parent=1 // pred_region
      %s32 = ssub.s32 1024, 1024
      %33 = vsyncadd [#allocation6], %s32
      %s34 = sshll.u32 [#allocation5], 4
      %s35 = int_to_ptr.vmem [resolvable:$true] %s34
      %40 = dma.hbm_to_vmem [thread:$0]  %s1, 1024, %s35, [#allocation6], 64, 64, 4
    $region9: #{tpu_custom_call.1} parent=1 // pred_fallthru
      _
    // Predicated region
    $region10: #{tpu_custom_call.1} parent=1 // pred_check
      _
    $region11: #{tpu_custom_call.1} parent=1 // pred_check_branch
      %42 = sbr.rel (0) target = $region13
    $region12: #{tpu_custom_call.1} parent=1 // pred_region
      %s44 = ssub.s32 1024, 1024
      %45 = vsyncadd [#allocation6], %s44
      %s46 = sshll.u32 [#allocation7], 4
      %s47 = int_to_ptr.vmem [resolvable:$true] %s46
      %52 = dma.hbm_to_vmem [thread:$0]  %s2, 1024, %s47, [#allocation6], 64, 64, 4
    $region13: #{tpu_custom_call.1} parent=1 // pred_fallthru
      _
    // Predicated region
    $region14: #{tpu_custom_call.1} parent=1 // pred_check
      _
    $region15: #{tpu_custom_call.1} parent=1 // pred_check_branch
      %54 = sbr.rel (0) target = $region17
    $region16: #{tpu_custom_call.1} parent=1 // pred_region
      _
    $region17: #{tpu_custom_call.1} parent=1 // pred_fallthru
      _
    // Predicated region
    $region18: #{tpu_custom_call.1} parent=1 // pred_check
      _
    $region19: #{tpu_custom_call.1} parent=1 // pred_check_branch
      %56 = sbr.rel (0) target = $region21
    $region20: #{tpu_custom_call.1} parent=1 // pred_region
      %s58 = ssub.s32 2048, 2048
      %59 = vsyncadd [#allocation9], %s58
      %s60 = sshll.u32 [#allocation8], 4
      %s61 = int_to_ptr.vmem [resolvable:$true] %s60
      %66 = dma.hbm_to_vmem [thread:$0]  %s4, 2048, %s61, [#allocation9], 64, 64, 4
    $region21: #{tpu_custom_call.1} parent=1 // pred_fallthru
      _
    // Predicated region
    $region22: #{tpu_custom_call.1} parent=1 // pred_check
      _
    $region23: #{tpu_custom_call.1} parent=1 // pred_check_branch
      %68 = sbr.rel (0) target = $region25
    $region24: #{tpu_custom_call.1} parent=1 // pred_region
      _
    $region25: #{tpu_custom_call.1} parent=1 // pred_fallthru
      _
    // Predicated region
    $region26: #{tpu_custom_call.1} parent=1 // pred_check
      _
    $region27: #{tpu_custom_call.1} parent=1 // pred_check_branch
      %70 = sbr.rel (0) target = $region29
    $region28: #{tpu_custom_call.1} parent=1 // pred_region
      %s72 = ssub.s32 1024, 1024
      %73 = vsyncadd [#allocation9], %s72
      %s74 = sshll.u32 [#allocation10], 4
      %s75 = int_to_ptr.vmem [resolvable:$true] %s74
      %80 = dma.hbm_to_vmem [thread:$0]  %s6, 1024, %s75, [#allocation9], 64, 64, 4
    $region29: #{tpu_custom_call.1} parent=1 // pred_fallthru
      _
    // Predicated region
    $region30: #{tpu_custom_call.1} parent=1 // pred_check
      _
    $region31: #{tpu_custom_call.1} parent=1 // pred_check_branch
      %82 = sbr.rel (0) target = $region33
    $region32: #{tpu_custom_call.1} parent=1 // pred_region
      _
    $region33: #{tpu_custom_call.1} parent=1 // pred_fallthru
      _
    // Predicated region
    $region34: #{tpu_custom_call.1} parent=1 // pred_check
      _
    $region35: #{tpu_custom_call.1} parent=1 // pred_check_branch
      %84 = sbr.rel (0) target = $region37
    $region36: #{tpu_custom_call.1} parent=1 // pred_region
      %85 = dma.done [#allocation3], 1024
    $region37: #{tpu_custom_call.1} parent=1 // pred_fallthru
      _
    // Predicated region
    $region38: #{tpu_custom_call.1} parent=1 // pred_check
      _
    $region39: #{tpu_custom_call.1} parent=1 // pred_check_branch
      %87 = sbr.rel (0) target = $region41
    $region40: #{tpu_custom_call.1} parent=1 // pred_region
      %88 = dma.done [#allocation6], 1024
    $region41: #{tpu_custom_call.1} parent=1 // pred_fallthru
      _
    // Predicated region
    $region42: #{tpu_custom_call.1} parent=1 // pred_check
      _
    $region43: #{tpu_custom_call.1} parent=1 // pred_check_branch
      %90 = sbr.rel (0) target = $region45
    $region44: #{tpu_custom_call.1} parent=1 // pred_region
      %91 = dma.done [#allocation6], 1024
    $region45: #{tpu_custom_call.1} parent=1 // pred_fallthru
      _
    // Predicated region
    $region46: #{tpu_custom_call.1} parent=1 // pred_check
      _
    $region47: #{tpu_custom_call.1} parent=1 // pred_check_branch
      %93 = sbr.rel (0) target = $region49
    $region48: #{tpu_custom_call.1} parent=1 // pred_region
      %94 = dma.done [#allocation9], 2048
    $region49: #{tpu_custom_call.1} parent=1 // pred_fallthru
      _
    // Predicated region
    $region50: #{tpu_custom_call.1} parent=1 // pred_check
      _
    $region51: #{tpu_custom_call.1} parent=1 // pred_check_branch
      %96 = sbr.rel (0) target = $region53
    $region52: #{tpu_custom_call.1} parent=1 // pred_region
      %97 = dma.done [#allocation9], 1024
    $region53: #{tpu_custom_call.1} parent=1 // pred_fallthru
      _
    %v99 = vld [vmem:[#allocation2] sm:$0xf]
    %v100 = vld [vmem:[#allocation2 + $0x4] sm:$0xf]
    %v101 = vld [vmem:[#allocation2 + $0x8] sm:$0xf]
    %v102 = vld [vmem:[#allocation2 + $0xc] sm:$0xf]
    %v103 = vld [vmem:[#allocation2 + $0x10] sm:$0xf]
    %v104 = vld [vmem:[#allocation2 + $0x14] sm:$0xf]
    %v105 = vld [vmem:[#allocation2 + $0x18] sm:$0xf]
    %v106 = vld [vmem:[#allocation2 + $0x1c] sm:$0xf]
    %v107 = vld [vmem:[#allocation2 + $0x20] sm:$0xf]
    %v108 = vld [vmem:[#allocation2 + $0x24] sm:$0xf]
    %v109 = vld [vmem:[#allocation2 + $0x28] sm:$0xf]
    %v110 = vld [vmem:[#allocation2 + $0x2c] sm:$0xf]
    %v111 = vld [vmem:[#allocation2 + $0x30] sm:$0xf]
    %v112 = vld [vmem:[#allocation2 + $0x34] sm:$0xf]
    %v113 = vld [vmem:[#allocation2 + $0x38] sm:$0xf]
    %v114 = vld [vmem:[#allocation2 + $0x3c] sm:$0xf]
    %v115 = vld [vmem:[#allocation7] sm:$0xf]
    %v116 = vld [vmem:[#allocation7 + $0x4] sm:$0xf]
    %v117 = vld [vmem:[#allocation7 + $0x8] sm:$0xf]
    %v118 = vld [vmem:[#allocation7 + $0xc] sm:$0xf]
    %v119 = vld [vmem:[#allocation7 + $0x10] sm:$0xf]
    %v120 = vld [vmem:[#allocation7 + $0x14] sm:$0xf]
    %v121 = vld [vmem:[#allocation7 + $0x18] sm:$0xf]
    %v122 = vld [vmem:[#allocation7 + $0x1c] sm:$0xf]
    %v123 = vld [vmem:[#allocation7 + $0x20] sm:$0xf]
    %v124 = vld [vmem:[#allocation7 + $0x24] sm:$0xf]
    %v125 = vld [vmem:[#allocation7 + $0x28] sm:$0xf]
    %v126 = vld [vmem:[#allocation7 + $0x2c] sm:$0xf]
    %v127 = vld [vmem:[#allocation7 + $0x30] sm:$0xf]
    %v128 = vld [vmem:[#allocation7 + $0x34] sm:$0xf]
    %v129 = vld [vmem:[#allocation7 + $0x38] sm:$0xf]
    %v130 = vld [vmem:[#allocation7 + $0x3c] sm:$0xf]
    %v131 = vld [vmem:[%s3] sm:$0x1]
    %v133 = vlaneseq
    %v134 = vshrl.u32 %v133, 7
    %v135 = vsub.s32 0, %v134
    %v136 = vrot.slane %v131, %v135
    %v154 = vunpack.c.l.b16 %v99
    %v155 = vunpack.c.l.b16 %v100
    %v156 = vunpack.c.l.b16 %v101
    %v157 = vunpack.c.l.b16 %v102
    %v158 = vunpack.c.l.b16 %v103
    %v159 = vunpack.c.l.b16 %v104
    %v160 = vunpack.c.l.b16 %v105
    %v161 = vunpack.c.l.b16 %v106
    %v162 = vunpack.c.l.b16 %v107
    %v163 = vunpack.c.l.b16 %v108
    %v164 = vunpack.c.l.b16 %v109
    %v165 = vunpack.c.l.b16 %v110
    %v166 = vunpack.c.l.b16 %v111
    %v167 = vunpack.c.l.b16 %v112
    %v168 = vunpack.c.l.b16 %v113
    %v169 = vunpack.c.l.b16 %v114
    %v170 = vpack.c.b16 %v155, %v154
    %v171 = vpack.c.b16 %v157, %v156
    %v172 = vpack.c.b16 %v159, %v158
    %v173 = vpack.c.b16 %v161, %v160
    %v174 = vpack.c.b16 %v163, %v162
    %v175 = vpack.c.b16 %v165, %v164
    %v176 = vpack.c.b16 %v167, %v166
    %v177 = vpack.c.b16 %v169, %v168
    %v202 = vunpack.c.l.b16 %v115
    %v203 = vunpack.c.l.b16 %v116
    %v204 = vunpack.c.l.b16 %v117
    %v205 = vunpack.c.l.b16 %v118
    %v206 = vunpack.c.l.b16 %v119
    %v207 = vunpack.c.l.b16 %v120
    %v208 = vunpack.c.l.b16 %v121
    %v209 = vunpack.c.l.b16 %v122
    %v210 = vunpack.c.l.b16 %v123
    %v211 = vunpack.c.l.b16 %v124
    %v212 = vunpack.c.l.b16 %v125
    %v213 = vunpack.c.l.b16 %v126
    %v214 = vunpack.c.l.b16 %v127
    %v215 = vunpack.c.l.b16 %v128
    %v216 = vunpack.c.l.b16 %v129
    %v217 = vunpack.c.l.b16 %v130
    %v218 = vpack.c.b16 %v203, %v202
    %v219 = vpack.c.b16 %v205, %v204
    %v220 = vpack.c.b16 %v207, %v206
    %v221 = vpack.c.b16 %v209, %v208
    %v222 = vpack.c.b16 %v211, %v210
    %v223 = vpack.c.b16 %v213, %v212
    %v224 = vpack.c.b16 %v215, %v214
    %v225 = vpack.c.b16 %v217, %v216
    %234 = vmatprep.subr.bf16.mxu0 0
    %235 = vmatpush1.bf16.msra.mxu0 %v225
    %236 = vmatprep.subr.bf16.mxu0 0
    %237 = vmatpush1.bf16.msra.mxu0 %v224
    %238 = vmatprep.subr.bf16.mxu0 0
    %239 = vmatpush1.bf16.msra.mxu0 %v223
    %240 = vmatprep.subr.bf16.mxu0 0
    %241 = vmatpush1.bf16.msra.mxu0 %v222
    %242 = vmatprep.subr.bf16.mxu0 0
    %243 = vmatpush1.bf16.msra.mxu0 %v221
    %244 = vmatprep.subr.bf16.mxu0 0
    %245 = vmatpush1.bf16.msra.mxu0 %v220
    %246 = vmatprep.subr.bf16.mxu0 0
    %247 = vmatpush1.bf16.msra.mxu0 %v219
    %248 = vmatprep.subr.bf16.mxu0 0
    %249 = vmatpush1.bf16.msra.mxu0 %v218
    %250 = vmatprep.subr.bf16.mxu0 0
    %251 = vmatpush2.bf16.msra.mxu0 0
    %252 = vmatprep.subr.bf16.mxu0 0
    %253 = vmatpush2.bf16.msra.mxu0 0
    %254 = vmatprep.subr.bf16.mxu0 0
    %255 = vmatpush2.bf16.msra.mxu0 0
    %256 = vmatprep.subr.bf16.mxu0 0
    %257 = vmatpush2.bf16.msra.mxu0 0
    %258 = vmatprep.subr.bf16.mxu0 0
    %259 = vmatpush2.bf16.msra.mxu0 0
    %260 = vmatprep.subr.bf16.mxu0 0
    %261 = vmatpush2.bf16.msra.mxu0 0
    %262 = vmatprep.subr.bf16.mxu0 0
    %263 = vmatpush2.bf16.msra.mxu0 0
    %264 = vmatprep.subr.bf16.mxu0 0
    %265 = vmatpush2.bf16.msra.mxu0 0
    %266 = vmatprep.mubr.bf16.mxu0 0
    %267 = vmatmul.mubr.bf16.gmra.mxu0 %v170
    %v268 = vpop.f32.mrf.mxu0
    %v269 = vadd.f32 %v136, %v268
    %v270 = vpop.f32.mrf.mxu0
    %v271 = vpop.f32.mrf.mxu0
    %v272 = vadd.f32 %v136, %v271
    %v273 = vpop.f32.mrf.mxu0
    %274 = vmatprep.mubr.bf16.mxu0 0
    %275 = vmatmul.mubr.bf16.gmra.mxu0 %v171
    %v276 = vpop.f32.mrf.mxu0
    %v277 = vadd.f32 %v136, %v276
    %v278 = vpop.f32.mrf.mxu0
    %v279 = vpop.f32.mrf.mxu0
    %v280 = vadd.f32 %v136, %v279
    %v281 = vpop.f32.mrf.mxu0
    %282 = vmatprep.mubr.bf16.mxu0 0
    %283 = vmatmul.mubr.bf16.gmra.mxu0 %v172
    %v284 = vpop.f32.mrf.mxu0
    %v285 = vadd.f32 %v136, %v284
    %v286 = vpop.f32.mrf.mxu0
    %v287 = vpop.f32.mrf.mxu0
    %v288 = vadd.f32 %v136, %v287
    %v289 = vpop.f32.mrf.mxu0
    %290 = vmatprep.mubr.bf16.mxu0 0
    %291 = vmatmul.mubr.bf16.gmra.mxu0 %v173
    %v292 = vpop.f32.mrf.mxu0
    %v293 = vadd.f32 %v136, %v292
    %v294 = vpop.f32.mrf.mxu0
    %v295 = vpop.f32.mrf.mxu0
    %v296 = vadd.f32 %v136, %v295
    %v297 = vpop.f32.mrf.mxu0
    %298 = vmatprep.mubr.bf16.mxu0 0
    %299 = vmatmul.mubr.bf16.gmra.mxu0 %v174
    %v300 = vpop.f32.mrf.mxu0
    %v301 = vadd.f32 %v136, %v300
    %v302 = vpop.f32.mrf.mxu0
    %v303 = vpop.f32.mrf.mxu0
    %v304 = vadd.f32 %v136, %v303
    %v305 = vpop.f32.mrf.mxu0
    %306 = vmatprep.mubr.bf16.mxu0 0
    %307 = vmatmul.mubr.bf16.gmra.mxu0 %v175
    %v308 = vpop.f32.mrf.mxu0
    %v309 = vadd.f32 %v136, %v308
    %v310 = vpop.f32.mrf.mxu0
    %v311 = vpop.f32.mrf.mxu0
    %v312 = vadd.f32 %v136, %v311
    %v313 = vpop.f32.mrf.mxu0
    %314 = vmatprep.mubr.bf16.mxu0 0
    %315 = vmatmul.mubr.bf16.gmra.mxu0 %v176
    %v316 = vpop.f32.mrf.mxu0
    %v317 = vadd.f32 %v136, %v316
    %v318 = vpop.f32.mrf.mxu0
    %v319 = vpop.f32.mrf.mxu0
    %v320 = vadd.f32 %v136, %v319
    %v321 = vpop.f32.mrf.mxu0
    %322 = vmatprep.mubr.bf16.mxu0 0
    %323 = vmatmul.mubr.bf16.gmra.mxu0 %v177
    %v324 = vpop.f32.mrf.mxu0
    %v325 = vadd.f32 %v136, %v324
    %v326 = vpop.f32.mrf.mxu0
    %v327 = vpop.f32.mrf.mxu0
    %v328 = vadd.f32 %v136, %v327
    %v329 = vpop.f32.mrf.mxu0
    %330 = vdwg.mxu0
    %v331 = vmax.f32 %v269, 0.0
    %v332 = vmax.f32 %v272, 0.0
    %v333 = vmax.f32 %v277, 0.0
    %v334 = vmax.f32 %v280, 0.0
    %v335 = vmax.f32 %v285, 0.0
    %v336 = vmax.f32 %v288, 0.0
    %v337 = vmax.f32 %v293, 0.0
    %v338 = vmax.f32 %v296, 0.0
    %v339 = vmax.f32 %v301, 0.0
    %v340 = vmax.f32 %v304, 0.0
    %v341 = vmax.f32 %v309, 0.0
    %v342 = vmax.f32 %v312, 0.0
    %v343 = vmax.f32 %v317, 0.0
    %v344 = vmax.f32 %v320, 0.0
    %v345 = vmax.f32 %v325, 0.0
    %v346 = vmax.f32 %v328, 0.0
    %v347 = vpack.c.bf16 %v332, %v331
    %v348 = vpack.c.bf16 %v334, %v333
    %v349 = vpack.c.bf16 %v336, %v335
    %v350 = vpack.c.bf16 %v338, %v337
    %v351 = vpack.c.bf16 %v340, %v339
    %v352 = vpack.c.bf16 %v342, %v341
    %v353 = vpack.c.bf16 %v344, %v343
    %v354 = vpack.c.bf16 %v346, %v345
    %v355 = vld [vmem:[#allocation8] sm:$0xf]
    %v356 = vld [vmem:[#allocation8 + $0x4] sm:$0xf]
    %v357 = vld [vmem:[#allocation8 + $0x8] sm:$0xf]
    %v358 = vld [vmem:[#allocation8 + $0xc] sm:$0xf]
    %v359 = vld [vmem:[#allocation8 + $0x10] sm:$0xf]
    %v360 = vld [vmem:[#allocation8 + $0x14] sm:$0xf]
    %v361 = vld [vmem:[#allocation8 + $0x18] sm:$0xf]
    %v362 = vld [vmem:[#allocation8 + $0x1c] sm:$0xf]
    %v363 = vld [vmem:[#allocation8 + $0x20] sm:$0xf]
    %v364 = vld [vmem:[#allocation8 + $0x24] sm:$0xf]
    %v365 = vld [vmem:[#allocation8 + $0x28] sm:$0xf]
    %v366 = vld [vmem:[#allocation8 + $0x2c] sm:$0xf]
    %v367 = vld [vmem:[#allocation8 + $0x30] sm:$0xf]
    %v368 = vld [vmem:[#allocation8 + $0x34] sm:$0xf]
    %v369 = vld [vmem:[#allocation8 + $0x38] sm:$0xf]
    %v370 = vld [vmem:[#allocation8 + $0x3c] sm:$0xf]
    %v387 = vunpack.c.l.b16 %v355
    %v388 = vunpack.c.l.b16 %v356
    %v389 = vunpack.c.l.b16 %v357
    %v390 = vunpack.c.l.b16 %v358
    %v391 = vunpack.c.l.b16 %v359
    %v392 = vunpack.c.l.b16 %v360
    %v393 = vunpack.c.l.b16 %v361
    %v394 = vunpack.c.l.b16 %v362
    %v395 = vunpack.c.l.b16 %v363
    %v396 = vunpack.c.l.b16 %v364
    %v397 = vunpack.c.l.b16 %v365
    %v398 = vunpack.c.l.b16 %v366
    %v399 = vunpack.c.l.b16 %v367
    %v400 = vunpack.c.l.b16 %v368
    %v401 = vunpack.c.l.b16 %v369
    %v402 = vunpack.c.l.b16 %v370
    %v403 = vpack.c.b16 %v388, %v387
    %v404 = vpack.c.b16 %v390, %v389
    %v405 = vpack.c.b16 %v392, %v391
    %v406 = vpack.c.b16 %v394, %v393
    %v407 = vpack.c.b16 %v396, %v395
    %v408 = vpack.c.b16 %v398, %v397
    %v409 = vpack.c.b16 %v400, %v399
    %v410 = vpack.c.b16 %v402, %v401
    %419 = vmatprep.subr.bf16.mxu0 0
    %420 = vmatpush1.bf16.msra.mxu0 %v410
    %421 = vmatprep.subr.bf16.mxu0 0
    %422 = vmatpush1.bf16.msra.mxu0 %v409
    %423 = vmatprep.subr.bf16.mxu0 0
    %424 = vmatpush1.bf16.msra.mxu0 %v408
    %425 = vmatprep.subr.bf16.mxu0 0
    %426 = vmatpush1.bf16.msra.mxu0 %v407
    %427 = vmatprep.subr.bf16.mxu0 0
    %428 = vmatpush1.bf16.msra.mxu0 %v406
    %429 = vmatprep.subr.bf16.mxu0 0
    %430 = vmatpush1.bf16.msra.mxu0 %v405
    %431 = vmatprep.subr.bf16.mxu0 0
    %432 = vmatpush1.bf16.msra.mxu0 %v404
    %433 = vmatprep.subr.bf16.mxu0 0
    %434 = vmatpush1.bf16.msra.mxu0 %v403
    %435 = vmatprep.subr.bf16.mxu0 0
    %436 = vmatpush2.bf16.msra.mxu0 0
    %437 = vmatprep.subr.bf16.mxu0 0
    %438 = vmatpush2.bf16.msra.mxu0 0
    %439 = vmatprep.subr.bf16.mxu0 0
    %440 = vmatpush2.bf16.msra.mxu0 0
    %441 = vmatprep.subr.bf16.mxu0 0
    %442 = vmatpush2.bf16.msra.mxu0 0
    %443 = vmatprep.subr.bf16.mxu0 0
    %444 = vmatpush2.bf16.msra.mxu0 0
    %445 = vmatprep.subr.bf16.mxu0 0
    %446 = vmatpush2.bf16.msra.mxu0 0
    %447 = vmatprep.subr.bf16.mxu0 0
    %448 = vmatpush2.bf16.msra.mxu0 0
    %449 = vmatprep.subr.bf16.mxu0 0
    %450 = vmatpush2.bf16.msra.mxu0 0
    %451 = vmatprep.mubr.bf16.mxu0 0
    %452 = vmatmul.mubr.bf16.gmra.mxu0 %v347
    %v453 = vpop.f32.mrf.mxu0
    %v454 = vadd.f32 0.0, %v453
    %v455 = vpop.f32.mrf.mxu0
    %v456 = vpop.f32.mrf.mxu0
    %v457 = vadd.f32 0.0, %v456
    %v458 = vpop.f32.mrf.mxu0
    %459 = vmatprep.mubr.bf16.mxu0 0
    %460 = vmatmul.mubr.bf16.gmra.mxu0 %v348
    %v461 = vpop.f32.mrf.mxu0
    %v462 = vadd.f32 0.0, %v461
    %v463 = vpop.f32.mrf.mxu0
    %v464 = vpop.f32.mrf.mxu0
    %v465 = vadd.f32 0.0, %v464
    %v466 = vpop.f32.mrf.mxu0
    %467 = vmatprep.mubr.bf16.mxu0 0
    %468 = vmatmul.mubr.bf16.gmra.mxu0 %v349
    %v469 = vpop.f32.mrf.mxu0
    %v470 = vadd.f32 0.0, %v469
    %v471 = vpop.f32.mrf.mxu0
    %v472 = vpop.f32.mrf.mxu0
    %v473 = vadd.f32 0.0, %v472
    %v474 = vpop.f32.mrf.mxu0
    %475 = vmatprep.mubr.bf16.mxu0 0
    %476 = vmatmul.mubr.bf16.gmra.mxu0 %v350
    %v477 = vpop.f32.mrf.mxu0
    %v478 = vadd.f32 0.0, %v477
    %v479 = vpop.f32.mrf.mxu0
    %v480 = vpop.f32.mrf.mxu0
    %v481 = vadd.f32 0.0, %v480
    %v482 = vpop.f32.mrf.mxu0
    %483 = vmatprep.mubr.bf16.mxu0 0
    %484 = vmatmul.mubr.bf16.gmra.mxu0 %v351
    %v485 = vpop.f32.mrf.mxu0
    %v486 = vadd.f32 0.0, %v485
    %v487 = vpop.f32.mrf.mxu0
    %v488 = vpop.f32.mrf.mxu0
    %v489 = vadd.f32 0.0, %v488
    %v490 = vpop.f32.mrf.mxu0
    %491 = vmatprep.mubr.bf16.mxu0 0
    %492 = vmatmul.mubr.bf16.gmra.mxu0 %v352
    %v493 = vpop.f32.mrf.mxu0
    %v494 = vadd.f32 0.0, %v493
    %v495 = vpop.f32.mrf.mxu0
    %v496 = vpop.f32.mrf.mxu0
    %v497 = vadd.f32 0.0, %v496
    %v498 = vpop.f32.mrf.mxu0
    %499 = vmatprep.mubr.bf16.mxu0 0
    %500 = vmatmul.mubr.bf16.gmra.mxu0 %v353
    %v501 = vpop.f32.mrf.mxu0
    %v502 = vadd.f32 0.0, %v501
    %v503 = vpop.f32.mrf.mxu0
    %v504 = vpop.f32.mrf.mxu0
    %v505 = vadd.f32 0.0, %v504
    %v506 = vpop.f32.mrf.mxu0
    %507 = vmatprep.mubr.bf16.mxu0 0
    %508 = vmatmul.mubr.bf16.gmra.mxu0 %v354
    %v509 = vpop.f32.mrf.mxu0
    %v510 = vadd.f32 0.0, %v509
    %v511 = vpop.f32.mrf.mxu0
    %v512 = vpop.f32.mrf.mxu0
    %v513 = vadd.f32 0.0, %v512
    %v514 = vpop.f32.mrf.mxu0
    %515 = vdwg.mxu0
    %v516 = vpack.c.bf16 %v457, %v454
    %v517 = vpack.c.bf16 %v465, %v462
    %v518 = vpack.c.bf16 %v473, %v470
    %v519 = vpack.c.bf16 %v481, %v478
    %v520 = vpack.c.bf16 %v489, %v486
    %v521 = vpack.c.bf16 %v497, %v494
    %v522 = vpack.c.bf16 %v505, %v502
    %v523 = vpack.c.bf16 %v513, %v510
    %v524 = vld [vmem:[#allocation5] sm:$0xf]
    %v525 = vld [vmem:[#allocation5 + $0x4] sm:$0xf]
    %v526 = vld [vmem:[#allocation5 + $0x8] sm:$0xf]
    %v527 = vld [vmem:[#allocation5 + $0xc] sm:$0xf]
    %v528 = vld [vmem:[#allocation5 + $0x10] sm:$0xf]
    %v529 = vld [vmem:[#allocation5 + $0x14] sm:$0xf]
    %v530 = vld [vmem:[#allocation5 + $0x18] sm:$0xf]
    %v531 = vld [vmem:[#allocation5 + $0x1c] sm:$0xf]
    %v532 = vld [vmem:[#allocation5 + $0x20] sm:$0xf]
    %v533 = vld [vmem:[#allocation5 + $0x24] sm:$0xf]
    %v534 = vld [vmem:[#allocation5 + $0x28] sm:$0xf]
    %v535 = vld [vmem:[#allocation5 + $0x2c] sm:$0xf]
    %v536 = vld [vmem:[#allocation5 + $0x30] sm:$0xf]
    %v537 = vld [vmem:[#allocation5 + $0x34] sm:$0xf]
    %v538 = vld [vmem:[#allocation5 + $0x38] sm:$0xf]
    %v539 = vld [vmem:[#allocation5 + $0x3c] sm:$0xf]
    %v540 = vld [vmem:[%s5] sm:$0x1]
    %v542 = vlaneseq
    %v543 = vshrl.u32 %v542, 7
    %v544 = vsub.s32 0, %v543
    %v545 = vrot.slane %v540, %v544
    %v563 = vunpack.c.l.b16 %v524
    %v564 = vunpack.c.l.b16 %v525
    %v565 = vunpack.c.l.b16 %v526
    %v566 = vunpack.c.l.b16 %v527
    %v567 = vunpack.c.l.b16 %v528
    %v568 = vunpack.c.l.b16 %v529
    %v569 = vunpack.c.l.b16 %v530
    %v570 = vunpack.c.l.b16 %v531
    %v571 = vunpack.c.l.b16 %v532
    %v572 = vunpack.c.l.b16 %v533
    %v573 = vunpack.c.l.b16 %v534
    %v574 = vunpack.c.l.b16 %v535
    %v575 = vunpack.c.l.b16 %v536
    %v576 = vunpack.c.l.b16 %v537
    %v577 = vunpack.c.l.b16 %v538
    %v578 = vunpack.c.l.b16 %v539
    %v579 = vpack.c.b16 %v564, %v563
    %v580 = vpack.c.b16 %v566, %v565
    %v581 = vpack.c.b16 %v568, %v567
    %v582 = vpack.c.b16 %v570, %v569
    %v583 = vpack.c.b16 %v572, %v571
    %v584 = vpack.c.b16 %v574, %v573
    %v585 = vpack.c.b16 %v576, %v575
    %v586 = vpack.c.b16 %v578, %v577
    %595 = vmatprep.subr.bf16.mxu0 0
    %596 = vmatpush1.bf16.msra.mxu0 %v523
    %597 = vmatprep.subr.bf16.mxu0 0
    %598 = vmatpush1.bf16.msra.mxu0 %v522
    %599 = vmatprep.subr.bf16.mxu0 0
    %600 = vmatpush1.bf16.msra.mxu0 %v521
    %601 = vmatprep.subr.bf16.mxu0 0
    %602 = vmatpush1.bf16.msra.mxu0 %v520
    %603 = vmatprep.subr.bf16.mxu0 0
    %604 = vmatpush1.bf16.msra.mxu0 %v519
    %605 = vmatprep.subr.bf16.mxu0 0
    %606 = vmatpush1.bf16.msra.mxu0 %v518
    %607 = vmatprep.subr.bf16.mxu0 0
    %608 = vmatpush1.bf16.msra.mxu0 %v517
    %609 = vmatprep.subr.bf16.mxu0 0
    %610 = vmatpush1.bf16.msra.mxu0 %v516
    %611 = vmatprep.subr.bf16.mxu0 0
    %612 = vmatpush2.bf16.msra.mxu0 0
    %613 = vmatprep.subr.bf16.mxu0 0
    %614 = vmatpush2.bf16.msra.mxu0 0
    %615 = vmatprep.subr.bf16.mxu0 0
    %616 = vmatpush2.bf16.msra.mxu0 0
    %617 = vmatprep.subr.bf16.mxu0 0
    %618 = vmatpush2.bf16.msra.mxu0 0
    %619 = vmatprep.subr.bf16.mxu0 0
    %620 = vmatpush2.bf16.msra.mxu0 0
    %621 = vmatprep.subr.bf16.mxu0 0
    %622 = vmatpush2.bf16.msra.mxu0 0
    %623 = vmatprep.subr.bf16.mxu0 0
    %624 = vmatpush2.bf16.msra.mxu0 0
    %625 = vmatprep.subr.bf16.mxu0 0
    %626 = vmatpush2.bf16.msra.mxu0 0
    %627 = vmatprep.mubr.bf16.mxu0 0
    %628 = vmatmul.mubr.bf16.gmra.mxu0 %v579
    %v629 = vpop.f32.mrf.mxu0
    %v630 = vadd.f32 %v545, %v629
    %v631 = vpop.f32.mrf.mxu0
    %v632 = vpop.f32.mrf.mxu0
    %v633 = vadd.f32 %v545, %v632
    %v634 = vpop.f32.mrf.mxu0
    %635 = vmatprep.mubr.bf16.mxu0 0
    %636 = vmatmul.mubr.bf16.gmra.mxu0 %v580
    %v637 = vpop.f32.mrf.mxu0
    %v638 = vadd.f32 %v545, %v637
    %v639 = vpop.f32.mrf.mxu0
    %v640 = vpop.f32.mrf.mxu0
    %v641 = vadd.f32 %v545, %v640
    %v642 = vpop.f32.mrf.mxu0
    %643 = vmatprep.mubr.bf16.mxu0 0
    %644 = vmatmul.mubr.bf16.gmra.mxu0 %v581
    %v645 = vpop.f32.mrf.mxu0
    %v646 = vadd.f32 %v545, %v645
    %v647 = vpop.f32.mrf.mxu0
    %v648 = vpop.f32.mrf.mxu0
    %v649 = vadd.f32 %v545, %v648
    %v650 = vpop.f32.mrf.mxu0
    %651 = vmatprep.mubr.bf16.mxu0 0
    %652 = vmatmul.mubr.bf16.gmra.mxu0 %v582
    %v653 = vpop.f32.mrf.mxu0
    %v654 = vadd.f32 %v545, %v653
    %v655 = vpop.f32.mrf.mxu0
    %v656 = vpop.f32.mrf.mxu0
    %v657 = vadd.f32 %v545, %v656
    %v658 = vpop.f32.mrf.mxu0
    %659 = vmatprep.mubr.bf16.mxu0 0
    %660 = vmatmul.mubr.bf16.gmra.mxu0 %v583
    %v661 = vpop.f32.mrf.mxu0
    %v662 = vadd.f32 %v545, %v661
    %v663 = vpop.f32.mrf.mxu0
    %v664 = vpop.f32.mrf.mxu0
    %v665 = vadd.f32 %v545, %v664
    %v666 = vpop.f32.mrf.mxu0
    %667 = vmatprep.mubr.bf16.mxu0 0
    %668 = vmatmul.mubr.bf16.gmra.mxu0 %v584
    %v669 = vpop.f32.mrf.mxu0
    %v670 = vadd.f32 %v545, %v669
    %v671 = vpop.f32.mrf.mxu0
    %v672 = vpop.f32.mrf.mxu0
    %v673 = vadd.f32 %v545, %v672
    %v674 = vpop.f32.mrf.mxu0
    %675 = vmatprep.mubr.bf16.mxu0 0
    %676 = vmatmul.mubr.bf16.gmra.mxu0 %v585
    %v677 = vpop.f32.mrf.mxu0
    %v678 = vadd.f32 %v545, %v677
    %v679 = vpop.f32.mrf.mxu0
    %v680 = vpop.f32.mrf.mxu0
    %v681 = vadd.f32 %v545, %v680
    %v682 = vpop.f32.mrf.mxu0
    %683 = vmatprep.mubr.bf16.mxu0 0
    %684 = vmatmul.mubr.bf16.gmra.mxu0 %v586
    %v685 = vpop.f32.mrf.mxu0
    %v686 = vadd.f32 %v545, %v685
    %v687 = vpop.f32.mrf.mxu0
    %v688 = vpop.f32.mrf.mxu0
    %v689 = vadd.f32 %v545, %v688
    %v690 = vpop.f32.mrf.mxu0
    %691 = vdwg.mxu0
    %v692 = vmax.f32 %v630, 0.0
    %v693 = vmax.f32 %v633, 0.0
    %v694 = vmax.f32 %v638, 0.0
    %v695 = vmax.f32 %v641, 0.0
    %v696 = vmax.f32 %v646, 0.0
    %v697 = vmax.f32 %v649, 0.0
    %v698 = vmax.f32 %v654, 0.0
    %v699 = vmax.f32 %v657, 0.0
    %v700 = vmax.f32 %v662, 0.0
    %v701 = vmax.f32 %v665, 0.0
    %v702 = vmax.f32 %v670, 0.0
    %v703 = vmax.f32 %v673, 0.0
    %v704 = vmax.f32 %v678, 0.0
    %v705 = vmax.f32 %v681, 0.0
    %v706 = vmax.f32 %v686, 0.0
    %v707 = vmax.f32 %v689, 0.0
    %v708 = vpack.c.bf16 %v693, %v692
    %v709 = vpack.c.bf16 %v695, %v694
    %v710 = vpack.c.bf16 %v697, %v696
    %v711 = vpack.c.bf16 %v699, %v698
    %v712 = vpack.c.bf16 %v701, %v700
    %v713 = vpack.c.bf16 %v703, %v702
    %v714 = vpack.c.bf16 %v705, %v704
    %v715 = vpack.c.bf16 %v707, %v706
    %s716 = scalar_lea.vmem [#allocation8], 64
    %v717 = vld [vmem:[%s716] sm:$0xf]
    %v718 = vld [vmem:[%s716 + $0x4] sm:$0xf]
    %v719 = vld [vmem:[%s716 + $0x8] sm:$0xf]
    %v720 = vld [vmem:[%s716 + $0xc] sm:$0xf]
    %v721 = vld [vmem:[%s716 + $0x10] sm:$0xf]
    %v722 = vld [vmem:[%s716 + $0x14] sm:$0xf]
    %v723 = vld [vmem:[%s716 + $0x18] sm:$0xf]
    %v724 = vld [vmem:[%s716 + $0x1c] sm:$0xf]
    %v725 = vld [vmem:[%s716 + $0x20] sm:$0xf]
    %v726 = vld [vmem:[%s716 + $0x24] sm:$0xf]
    %v727 = vld [vmem:[%s716 + $0x28] sm:$0xf]
    %v728 = vld [vmem:[%s716 + $0x2c] sm:$0xf]
    %v729 = vld [vmem:[%s716 + $0x30] sm:$0xf]
    %v730 = vld [vmem:[%s716 + $0x34] sm:$0xf]
    %v731 = vld [vmem:[%s716 + $0x38] sm:$0xf]
    %v732 = vld [vmem:[%s716 + $0x3c] sm:$0xf]
    %v749 = vunpack.c.l.b16 %v717
    %v750 = vunpack.c.l.b16 %v718
    %v751 = vunpack.c.l.b16 %v719
    %v752 = vunpack.c.l.b16 %v720
    %v753 = vunpack.c.l.b16 %v721
    %v754 = vunpack.c.l.b16 %v722
    %v755 = vunpack.c.l.b16 %v723
    %v756 = vunpack.c.l.b16 %v724
    %v757 = vunpack.c.l.b16 %v725
    %v758 = vunpack.c.l.b16 %v726
    %v759 = vunpack.c.l.b16 %v727
    %v760 = vunpack.c.l.b16 %v728
    %v761 = vunpack.c.l.b16 %v729
    %v762 = vunpack.c.l.b16 %v730
    %v763 = vunpack.c.l.b16 %v731
    %v764 = vunpack.c.l.b16 %v732
    %v765 = vpack.c.b16 %v750, %v749
    %v766 = vpack.c.b16 %v752, %v751
    %v767 = vpack.c.b16 %v754, %v753
    %v768 = vpack.c.b16 %v756, %v755
    %v769 = vpack.c.b16 %v758, %v757
    %v770 = vpack.c.b16 %v760, %v759
    %v771 = vpack.c.b16 %v762, %v761
    %v772 = vpack.c.b16 %v764, %v763
    %781 = vmatprep.subr.bf16.mxu0 0
    %782 = vmatpush1.bf16.msra.mxu0 %v772
    %783 = vmatprep.subr.bf16.mxu0 0
    %784 = vmatpush1.bf16.msra.mxu0 %v771
    %785 = vmatprep.subr.bf16.mxu0 0
    %786 = vmatpush1.bf16.msra.mxu0 %v770
    %787 = vmatprep.subr.bf16.mxu0 0
    %788 = vmatpush1.bf16.msra.mxu0 %v769
    %789 = vmatprep.subr.bf16.mxu0 0
    %790 = vmatpush1.bf16.msra.mxu0 %v768
    %791 = vmatprep.subr.bf16.mxu0 0
    %792 = vmatpush1.bf16.msra.mxu0 %v767
    %793 = vmatprep.subr.bf16.mxu0 0
    %794 = vmatpush1.bf16.msra.mxu0 %v766
    %795 = vmatprep.subr.bf16.mxu0 0
    %796 = vmatpush1.bf16.msra.mxu0 %v765
    %797 = vmatprep.subr.bf16.mxu0 0
    %798 = vmatpush2.bf16.msra.mxu0 0
    %799 = vmatprep.subr.bf16.mxu0 0
    %800 = vmatpush2.bf16.msra.mxu0 0
    %801 = vmatprep.subr.bf16.mxu0 0
    %802 = vmatpush2.bf16.msra.mxu0 0
    %803 = vmatprep.subr.bf16.mxu0 0
    %804 = vmatpush2.bf16.msra.mxu0 0
    %805 = vmatprep.subr.bf16.mxu0 0
    %806 = vmatpush2.bf16.msra.mxu0 0
    %807 = vmatprep.subr.bf16.mxu0 0
    %808 = vmatpush2.bf16.msra.mxu0 0
    %809 = vmatprep.subr.bf16.mxu0 0
    %810 = vmatpush2.bf16.msra.mxu0 0
    %811 = vmatprep.subr.bf16.mxu0 0
    %812 = vmatpush2.bf16.msra.mxu0 0
    %813 = vmatprep.mubr.bf16.mxu0 0
    %814 = vmatmul.mubr.bf16.gmra.mxu0 %v708
    %v815 = vpop.f32.mrf.mxu0
    %v816 = vadd.f32 0.0, %v815
    %v817 = vpop.f32.mrf.mxu0
    %v818 = vpop.f32.mrf.mxu0
    %v819 = vadd.f32 0.0, %v818
    %v820 = vpop.f32.mrf.mxu0
    %821 = vmatprep.mubr.bf16.mxu0 0
    %822 = vmatmul.mubr.bf16.gmra.mxu0 %v709
    %v823 = vpop.f32.mrf.mxu0
    %v824 = vadd.f32 0.0, %v823
    %v825 = vpop.f32.mrf.mxu0
    %v826 = vpop.f32.mrf.mxu0
    %v827 = vadd.f32 0.0, %v826
    %v828 = vpop.f32.mrf.mxu0
    %829 = vmatprep.mubr.bf16.mxu0 0
    %830 = vmatmul.mubr.bf16.gmra.mxu0 %v710
    %v831 = vpop.f32.mrf.mxu0
    %v832 = vadd.f32 0.0, %v831
    %v833 = vpop.f32.mrf.mxu0
    %v834 = vpop.f32.mrf.mxu0
    %v835 = vadd.f32 0.0, %v834
    %v836 = vpop.f32.mrf.mxu0
    %837 = vmatprep.mubr.bf16.mxu0 0
    %838 = vmatmul.mubr.bf16.gmra.mxu0 %v711
    %v839 = vpop.f32.mrf.mxu0
    %v840 = vadd.f32 0.0, %v839
    %v841 = vpop.f32.mrf.mxu0
    %v842 = vpop.f32.mrf.mxu0
    %v843 = vadd.f32 0.0, %v842
    %v844 = vpop.f32.mrf.mxu0
    %845 = vmatprep.mubr.bf16.mxu0 0
    %846 = vmatmul.mubr.bf16.gmra.mxu0 %v712
    %v847 = vpop.f32.mrf.mxu0
    %v848 = vadd.f32 0.0, %v847
    %v849 = vpop.f32.mrf.mxu0
    %v850 = vpop.f32.mrf.mxu0
    %v851 = vadd.f32 0.0, %v850
    %v852 = vpop.f32.mrf.mxu0
    %853 = vmatprep.mubr.bf16.mxu0 0
    %854 = vmatmul.mubr.bf16.gmra.mxu0 %v713
    %v855 = vpop.f32.mrf.mxu0
    %v856 = vadd.f32 0.0, %v855
    %v857 = vpop.f32.mrf.mxu0
    %v858 = vpop.f32.mrf.mxu0
    %v859 = vadd.f32 0.0, %v858
    %v860 = vpop.f32.mrf.mxu0
    %861 = vmatprep.mubr.bf16.mxu0 0
    %862 = vmatmul.mubr.bf16.gmra.mxu0 %v714
    %v863 = vpop.f32.mrf.mxu0
    %v864 = vadd.f32 0.0, %v863
    %v865 = vpop.f32.mrf.mxu0
    %v866 = vpop.f32.mrf.mxu0
    %v867 = vadd.f32 0.0, %v866
    %v868 = vpop.f32.mrf.mxu0
    %869 = vmatprep.mubr.bf16.mxu0 0
    %870 = vmatmul.mubr.bf16.gmra.mxu0 %v715
    %v871 = vpop.f32.mrf.mxu0
    %v872 = vadd.f32 0.0, %v871
    %v873 = vpop.f32.mrf.mxu0
    %v874 = vpop.f32.mrf.mxu0
    %v875 = vadd.f32 0.0, %v874
    %v876 = vpop.f32.mrf.mxu0
    %877 = vdwg.mxu0
    %v878 = vpack.c.bf16 %v819, %v816
    %v879 = vpack.c.bf16 %v827, %v824
    %v880 = vpack.c.bf16 %v835, %v832
    %v881 = vpack.c.bf16 %v843, %v840
    %v882 = vpack.c.bf16 %v851, %v848
    %v883 = vpack.c.bf16 %v859, %v856
    %v884 = vpack.c.bf16 %v867, %v864
    %v885 = vpack.c.bf16 %v875, %v872
    %s886 = scalar_lea.vmem %s5, 1
    %v887 = vld [vmem:[%s886] sm:$0x1]
    %v889 = vlaneseq
    %v890 = vshrl.u32 %v889, 7
    %v891 = vsub.s32 0, %v890
    %v892 = vrot.slane %v887, %v891
    %894 = vmatprep.subr.bf16.mxu0 0
    %895 = vmatpush1.bf16.msra.mxu0 %v885
    %896 = vmatprep.subr.bf16.mxu0 0
    %897 = vmatpush1.bf16.msra.mxu0 %v884
    %898 = vmatprep.subr.bf16.mxu0 0
    %899 = vmatpush1.bf16.msra.mxu0 %v883
    %900 = vmatprep.subr.bf16.mxu0 0
    %901 = vmatpush1.bf16.msra.mxu0 %v882
    %902 = vmatprep.subr.bf16.mxu0 0
    %903 = vmatpush1.bf16.msra.mxu0 %v881
    %904 = vmatprep.subr.bf16.mxu0 0
    %905 = vmatpush1.bf16.msra.mxu0 %v880
    %906 = vmatprep.subr.bf16.mxu0 0
    %907 = vmatpush1.bf16.msra.mxu0 %v879
    %908 = vmatprep.subr.bf16.mxu0 0
    %909 = vmatpush1.bf16.msra.mxu0 %v878
    %910 = vmatprep.subr.bf16.mxu0 0
    %911 = vmatpush2.bf16.msra.mxu0 0
    %912 = vmatprep.subr.bf16.mxu0 0
    %913 = vmatpush2.bf16.msra.mxu0 0
    %914 = vmatprep.subr.bf16.mxu0 0
    %915 = vmatpush2.bf16.msra.mxu0 0
    %916 = vmatprep.subr.bf16.mxu0 0
    %917 = vmatpush2.bf16.msra.mxu0 0
    %918 = vmatprep.subr.bf16.mxu0 0
    %919 = vmatpush2.bf16.msra.mxu0 0
    %920 = vmatprep.subr.bf16.mxu0 0
    %921 = vmatpush2.bf16.msra.mxu0 0
    %922 = vmatprep.subr.bf16.mxu0 0
    %923 = vmatpush2.bf16.msra.mxu0 0
    %924 = vmatprep.subr.bf16.mxu0 0
    %925 = vmatpush2.bf16.msra.mxu0 0
    %926 = vmatprep.mubr.bf16.mxu0 0
    %927 = vmatmul.mubr.bf16.gmra.mxu0 %v579
    %v928 = vpop.f32.mrf.mxu0
    %v929 = vadd.f32 %v892, %v928
    %v930 = vpop.f32.mrf.mxu0
    %v931 = vpop.f32.mrf.mxu0
    %v932 = vadd.f32 %v892, %v931
    %v933 = vpop.f32.mrf.mxu0
    %934 = vmatprep.mubr.bf16.mxu0 0
    %935 = vmatmul.mubr.bf16.gmra.mxu0 %v580
    %v936 = vpop.f32.mrf.mxu0
    %v937 = vadd.f32 %v892, %v936
    %v938 = vpop.f32.mrf.mxu0
    %v939 = vpop.f32.mrf.mxu0
    %v940 = vadd.f32 %v892, %v939
    %v941 = vpop.f32.mrf.mxu0
    %942 = vmatprep.mubr.bf16.mxu0 0
    %943 = vmatmul.mubr.bf16.gmra.mxu0 %v581
    %v944 = vpop.f32.mrf.mxu0
    %v945 = vadd.f32 %v892, %v944
    %v946 = vpop.f32.mrf.mxu0
    %v947 = vpop.f32.mrf.mxu0
    %v948 = vadd.f32 %v892, %v947
    %v949 = vpop.f32.mrf.mxu0
    %950 = vmatprep.mubr.bf16.mxu0 0
    %951 = vmatmul.mubr.bf16.gmra.mxu0 %v582
    %v952 = vpop.f32.mrf.mxu0
    %v953 = vadd.f32 %v892, %v952
    %v954 = vpop.f32.mrf.mxu0
    %v955 = vpop.f32.mrf.mxu0
    %v956 = vadd.f32 %v892, %v955
    %v957 = vpop.f32.mrf.mxu0
    %958 = vmatprep.mubr.bf16.mxu0 0
    %959 = vmatmul.mubr.bf16.gmra.mxu0 %v583
    %v960 = vpop.f32.mrf.mxu0
    %v961 = vadd.f32 %v892, %v960
    %v962 = vpop.f32.mrf.mxu0
    %v963 = vpop.f32.mrf.mxu0
    %v964 = vadd.f32 %v892, %v963
    %v965 = vpop.f32.mrf.mxu0
    %966 = vmatprep.mubr.bf16.mxu0 0
    %967 = vmatmul.mubr.bf16.gmra.mxu0 %v584
    %v968 = vpop.f32.mrf.mxu0
    %v969 = vadd.f32 %v892, %v968
    %v970 = vpop.f32.mrf.mxu0
    %v971 = vpop.f32.mrf.mxu0
    %v972 = vadd.f32 %v892, %v971
    %v973 = vpop.f32.mrf.mxu0
    %974 = vmatprep.mubr.bf16.mxu0 0
    %975 = vmatmul.mubr.bf16.gmra.mxu0 %v585
    %v976 = vpop.f32.mrf.mxu0
    %v977 = vadd.f32 %v892, %v976
    %v978 = vpop.f32.mrf.mxu0
    %v979 = vpop.f32.mrf.mxu0
    %v980 = vadd.f32 %v892, %v979
    %v981 = vpop.f32.mrf.mxu0
    %982 = vmatprep.mubr.bf16.mxu0 0
    %983 = vmatmul.mubr.bf16.gmra.mxu0 %v586
    %v984 = vpop.f32.mrf.mxu0
    %v985 = vadd.f32 %v892, %v984
    %v986 = vpop.f32.mrf.mxu0
    %v987 = vpop.f32.mrf.mxu0
    %v988 = vadd.f32 %v892, %v987
    %v989 = vpop.f32.mrf.mxu0
    %990 = vdwg.mxu0
    %v991 = vmax.f32 %v929, 0.0
    %v992 = vmax.f32 %v932, 0.0
    %v993 = vmax.f32 %v937, 0.0
    %v994 = vmax.f32 %v940, 0.0
    %v995 = vmax.f32 %v945, 0.0
    %v996 = vmax.f32 %v948, 0.0
    %v997 = vmax.f32 %v953, 0.0
    %v998 = vmax.f32 %v956, 0.0
    %v999 = vmax.f32 %v961, 0.0
    %v1000 = vmax.f32 %v964, 0.0
    %v1001 = vmax.f32 %v969, 0.0
    %v1002 = vmax.f32 %v972, 0.0
    %v1003 = vmax.f32 %v977, 0.0
    %v1004 = vmax.f32 %v980, 0.0
    %v1005 = vmax.f32 %v985, 0.0
    %v1006 = vmax.f32 %v988, 0.0
    %v1007 = vpack.c.bf16 %v992, %v991
    %v1008 = vpack.c.bf16 %v994, %v993
    %v1009 = vpack.c.bf16 %v996, %v995
    %v1010 = vpack.c.bf16 %v998, %v997
    %v1011 = vpack.c.bf16 %v1000, %v999
    %v1012 = vpack.c.bf16 %v1002, %v1001
    %v1013 = vpack.c.bf16 %v1004, %v1003
    %v1014 = vpack.c.bf16 %v1006, %v1005
    %v1015 = vld [vmem:[#allocation10] sm:$0xf]
    %v1016 = vld [vmem:[#allocation10 + $0x4] sm:$0xf]
    %v1017 = vld [vmem:[#allocation10 + $0x8] sm:$0xf]
    %v1018 = vld [vmem:[#allocation10 + $0xc] sm:$0xf]
    %v1019 = vld [vmem:[#allocation10 + $0x10] sm:$0xf]
    %v1020 = vld [vmem:[#allocation10 + $0x14] sm:$0xf]
    %v1021 = vld [vmem:[#allocation10 + $0x18] sm:$0xf]
    %v1022 = vld [vmem:[#allocation10 + $0x1c] sm:$0xf]
    %v1023 = vld [vmem:[#allocation10 + $0x20] sm:$0xf]
    %v1024 = vld [vmem:[#allocation10 + $0x24] sm:$0xf]
    %v1025 = vld [vmem:[#allocation10 + $0x28] sm:$0xf]
    %v1026 = vld [vmem:[#allocation10 + $0x2c] sm:$0xf]
    %v1027 = vld [vmem:[#allocation10 + $0x30] sm:$0xf]
    %v1028 = vld [vmem:[#allocation10 + $0x34] sm:$0xf]
    %v1029 = vld [vmem:[#allocation10 + $0x38] sm:$0xf]
    %v1030 = vld [vmem:[#allocation10 + $0x3c] sm:$0xf]
    %v1031 = vld [vmem:[%s7] sm:$0x1]
    %v1033 = vlaneseq
    %v1034 = vshrl.u32 %v1033, 7
    %v1035 = vsub.s32 0, %v1034
    %v1036 = vrot.slane %v1031, %v1035
    %v1054 = vunpack.c.l.b16 %v1015
    %v1055 = vunpack.c.l.b16 %v1016
    %v1056 = vunpack.c.l.b16 %v1017
    %v1057 = vunpack.c.l.b16 %v1018
    %v1058 = vunpack.c.l.b16 %v1019
    %v1059 = vunpack.c.l.b16 %v1020
    %v1060 = vunpack.c.l.b16 %v1021
    %v1061 = vunpack.c.l.b16 %v1022
    %v1062 = vunpack.c.l.b16 %v1023
    %v1063 = vunpack.c.l.b16 %v1024
    %v1064 = vunpack.c.l.b16 %v1025
    %v1065 = vunpack.c.l.b16 %v1026
    %v1066 = vunpack.c.l.b16 %v1027
    %v1067 = vunpack.c.l.b16 %v1028
    %v1068 = vunpack.c.l.b16 %v1029
    %v1069 = vunpack.c.l.b16 %v1030
    %v1070 = vpack.c.b16 %v1055, %v1054
    %v1071 = vpack.c.b16 %v1057, %v1056
    %v1072 = vpack.c.b16 %v1059, %v1058
    %v1073 = vpack.c.b16 %v1061, %v1060
    %v1074 = vpack.c.b16 %v1063, %v1062
    %v1075 = vpack.c.b16 %v1065, %v1064
    %v1076 = vpack.c.b16 %v1067, %v1066
    %v1077 = vpack.c.b16 %v1069, %v1068
    %1086 = vmatprep.subr.bf16.mxu0 0
    %1087 = vmatpush1.bf16.msra.mxu0 %v1077
    %1088 = vmatprep.subr.bf16.mxu0 0
    %1089 = vmatpush1.bf16.msra.mxu0 %v1076
    %1090 = vmatprep.subr.bf16.mxu0 0
    %1091 = vmatpush1.bf16.msra.mxu0 %v1075
    %1092 = vmatprep.subr.bf16.mxu0 0
    %1093 = vmatpush1.bf16.msra.mxu0 %v1074
    %1094 = vmatprep.subr.bf16.mxu0 0
    %1095 = vmatpush1.bf16.msra.mxu0 %v1073
    %1096 = vmatprep.subr.bf16.mxu0 0
    %1097 = vmatpush1.bf16.msra.mxu0 %v1072
    %1098 = vmatprep.subr.bf16.mxu0 0
    %1099 = vmatpush1.bf16.msra.mxu0 %v1071
    %1100 = vmatprep.subr.bf16.mxu0 0
    %1101 = vmatpush1.bf16.msra.mxu0 %v1070
    %1102 = vmatprep.subr.bf16.mxu0 0
    %1103 = vmatpush2.bf16.msra.mxu0 0
    %1104 = vmatprep.subr.bf16.mxu0 0
    %1105 = vmatpush2.bf16.msra.mxu0 0
    %1106 = vmatprep.subr.bf16.mxu0 0
    %1107 = vmatpush2.bf16.msra.mxu0 0
    %1108 = vmatprep.subr.bf16.mxu0 0
    %1109 = vmatpush2.bf16.msra.mxu0 0
    %1110 = vmatprep.subr.bf16.mxu0 0
    %1111 = vmatpush2.bf16.msra.mxu0 0
    %1112 = vmatprep.subr.bf16.mxu0 0
    %1113 = vmatpush2.bf16.msra.mxu0 0
    %1114 = vmatprep.subr.bf16.mxu0 0
    %1115 = vmatpush2.bf16.msra.mxu0 0
    %1116 = vmatprep.subr.bf16.mxu0 0
    %1117 = vmatpush2.bf16.msra.mxu0 0
    %1118 = vmatprep.mubr.bf16.mxu0 0
    %1119 = vmatmul.mubr.bf16.gmra.mxu0 %v1007
    %v1120 = vpop.f32.mrf.mxu0
    %v1121 = vadd.f32 %v1036, %v1120
    %v1122 = vpop.f32.mrf.mxu0
    %v1123 = vpop.f32.mrf.mxu0
    %v1124 = vadd.f32 %v1036, %v1123
    %v1125 = vpop.f32.mrf.mxu0
    %1126 = vmatprep.mubr.bf16.mxu0 0
    %1127 = vmatmul.mubr.bf16.gmra.mxu0 %v1008
    %v1128 = vpop.f32.mrf.mxu0
    %v1129 = vadd.f32 %v1036, %v1128
    %v1130 = vpop.f32.mrf.mxu0
    %v1131 = vpop.f32.mrf.mxu0
    %v1132 = vadd.f32 %v1036, %v1131
    %v1133 = vpop.f32.mrf.mxu0
    %1134 = vmatprep.mubr.bf16.mxu0 0
    %1135 = vmatmul.mubr.bf16.gmra.mxu0 %v1009
    %v1136 = vpop.f32.mrf.mxu0
    %v1137 = vadd.f32 %v1036, %v1136
    %v1138 = vpop.f32.mrf.mxu0
    %v1139 = vpop.f32.mrf.mxu0
    %v1140 = vadd.f32 %v1036, %v1139
    %v1141 = vpop.f32.mrf.mxu0
    %1142 = vmatprep.mubr.bf16.mxu0 0
    %1143 = vmatmul.mubr.bf16.gmra.mxu0 %v1010
    %v1144 = vpop.f32.mrf.mxu0
    %v1145 = vadd.f32 %v1036, %v1144
    %v1146 = vpop.f32.mrf.mxu0
    %v1147 = vpop.f32.mrf.mxu0
    %v1148 = vadd.f32 %v1036, %v1147
    %v1149 = vpop.f32.mrf.mxu0
    %1150 = vmatprep.mubr.bf16.mxu0 0
    %1151 = vmatmul.mubr.bf16.gmra.mxu0 %v1011
    %v1152 = vpop.f32.mrf.mxu0
    %v1153 = vadd.f32 %v1036, %v1152
    %v1154 = vpop.f32.mrf.mxu0
    %v1155 = vpop.f32.mrf.mxu0
    %v1156 = vadd.f32 %v1036, %v1155
    %v1157 = vpop.f32.mrf.mxu0
    %1158 = vmatprep.mubr.bf16.mxu0 0
    %1159 = vmatmul.mubr.bf16.gmra.mxu0 %v1012
    %v1160 = vpop.f32.mrf.mxu0
    %v1161 = vadd.f32 %v1036, %v1160
    %v1162 = vpop.f32.mrf.mxu0
    %v1163 = vpop.f32.mrf.mxu0
    %v1164 = vadd.f32 %v1036, %v1163
    %v1165 = vpop.f32.mrf.mxu0
    %1166 = vmatprep.mubr.bf16.mxu0 0
    %1167 = vmatmul.mubr.bf16.gmra.mxu0 %v1013
    %v1168 = vpop.f32.mrf.mxu0
    %v1169 = vadd.f32 %v1036, %v1168
    %v1170 = vpop.f32.mrf.mxu0
    %v1171 = vpop.f32.mrf.mxu0
    %v1172 = vadd.f32 %v1036, %v1171
    %v1173 = vpop.f32.mrf.mxu0
    %1174 = vmatprep.mubr.bf16.mxu0 0
    %1175 = vmatmul.mubr.bf16.gmra.mxu0 %v1014
    %v1176 = vpop.f32.mrf.mxu0
    %v1177 = vadd.f32 %v1036, %v1176
    %v1178 = vpop.f32.mrf.mxu0
    %v1179 = vpop.f32.mrf.mxu0
    %v1180 = vadd.f32 %v1036, %v1179
    %v1181 = vpop.f32.mrf.mxu0
    %1182 = vdwg.mxu0
    %1183 = vst [vmem:[#allocation11] sm:$0xff] %v1121
    %1184 = vst [vmem:[#allocation11 + $0x8] sm:$0xff] %v1124
    %1185 = vst [vmem:[#allocation11 + $0x10] sm:$0xff] %v1129
    %1186 = vst [vmem:[#allocation11 + $0x18] sm:$0xff] %v1132
    %1187 = vst [vmem:[#allocation11 + $0x20] sm:$0xff] %v1137
    %1188 = vst [vmem:[#allocation11 + $0x28] sm:$0xff] %v1140
    %1189 = vst [vmem:[#allocation11 + $0x30] sm:$0xff] %v1145
    %1190 = vst [vmem:[#allocation11 + $0x38] sm:$0xff] %v1148
    %1191 = vst [vmem:[#allocation11 + $0x40] sm:$0xff] %v1153
    %1192 = vst [vmem:[#allocation11 + $0x48] sm:$0xff] %v1156
    %1193 = vst [vmem:[#allocation11 + $0x50] sm:$0xff] %v1161
    %1194 = vst [vmem:[#allocation11 + $0x58] sm:$0xff] %v1164
    %1195 = vst [vmem:[#allocation11 + $0x60] sm:$0xff] %v1169
    %1196 = vst [vmem:[#allocation11 + $0x68] sm:$0xff] %v1172
    %1197 = vst [vmem:[#allocation11 + $0x70] sm:$0xff] %v1177
    %1198 = vst [vmem:[#allocation11 + $0x78] sm:$0xff] %v1180
    // Predicated region
    $region54: #{tpu_custom_call.1} parent=1 // pred_check
      _
    $region55: #{tpu_custom_call.1} parent=1 // pred_check_branch
      %1200 = sbr.rel (0) target = $region57
    $region56: #{tpu_custom_call.1} parent=1 // pred_region
      %s1202 = ssub.s32 2048, 2048
      %1203 = vsyncadd [#allocation4], %s1202
      %s1204 = sshll.u32 [#allocation11], 4
      %s1205 = int_to_ptr.vmem [resolvable:$true] %s1204
      %1210 = dma.vmem_to_hbm [thread:$0]  %s1205, 2048, %s8, [#allocation4], 128, 128, 8
    $region57: #{tpu_custom_call.1} parent=1 // pred_fallthru
      _
    // Predicated region
    $region58: #{tpu_custom_call.1} parent=1 // pred_check
      _
    $region59: #{tpu_custom_call.1} parent=1 // pred_check_branch
      %1212 = sbr.rel (0) target = $region61
    $region60: #{tpu_custom_call.1} parent=1 // pred_region
      %1213 = dma.done [#allocation4], 2048
    $region61: #{tpu_custom_call.1} parent=1 // pred_fallthru
      _
    %1214 = vsyncpa [#allocation3], 1
    %1215 = vsyncpa [#allocation6], 1
    %1216 = vsyncpa [#allocation9], 1
    %1217 = vsyncpa [#allocation4], 1

</llo_original>
